<compile_context>
chip_gen: v6e
topology: v6e:2x2x1
jax: 0.10.0
libtpu: 0.0.40
codegen_flags: <defaults>
</compile_context>

<pallas_src>
import jax
import jax.numpy as jnp
from jax import lax
from jax.experimental import pallas as pl
from jax.experimental.pallas import tpu as pltpu

_PT = 8  # sublane-aligned row offset of the valid q rows inside the padded scratch


def _sag_kernel(g_ref, x_ref, t_ref, w1g_ref, w1x_ref, b_ref, out_ref, p_ref):
    bs, H, W = out_ref.shape
    Cg = g_ref.shape[1] // H
    Cx = x_ref.shape[1] // H
    W7 = 7 * W

    # ---- Stage 1: channel mean / max / 1x1-conv in ONE pass over channels.
    #      Each channel slab is read from the ref once (native dtype), upcast
    #      per-vreg, and folded into three accumulators.
    def channel_maps(ref, C, w1_ref, b1):
        s = mx = ws = None
        for c in range(C):                       # unrolled; C is small here
            slab = ref[:, c * H:(c + 1) * H, :].astype(jnp.float32)  # (bs,H,W)
            wslab = slab * w1_ref[c]
            if c == 0:
                s, mx, ws = slab, slab, wslab
            else:
                s = s + slab
                mx = jnp.maximum(mx, slab)
                ws = ws + wslab
        return s * (1.0 / C), mx, ws + b1        # avg, max, 1x1-conv(+bias)

    avg_g, max_g, c1_g = channel_maps(g_ref, Cg, w1g_ref, b_ref[0])
    avg_x, max_x, c1_x = channel_maps(x_ref, Cx, w1x_ref, b_ref[1])

    # ---- Stage 2a: W-direction of the fused 6-channel 7x7 conv as banded
    #      Toeplitz matmuls on the MXU, bf16 operands + f32 accumulation.
    rows = bs * H

    def mm(a, c):
        return jnp.dot(a.reshape(rows, W).astype(jnp.bfloat16), t_ref[c],
                       preferred_element_type=jnp.float32)

    qa = mm(avg_g, 0) + mm(c1_g, 2) + mm(max_x, 4)
    qb = mm(max_g, 1) + mm(avg_x, 3) + mm(c1_x, 5)
    q = (qa + qb).reshape(bs, H, W7)             # (bs, H, 7W)

    # ---- Stage 2b: H-direction = 7 shifted slice-adds against a padded
    #      VMEM scratch.  Only the (small) halo/alignment rows are zeroed;
    #      the q region is fully overwritten each step.
    p_ref[:, 0:_PT, :] = jnp.zeros((bs, _PT, W7), jnp.float32)
    p_ref[:, _PT + H:_PT + H + 3, :] = jnp.zeros((bs, 3, W7), jnp.float32)
    p_ref[:, _PT:_PT + H, :] = q                 # sublane-aligned store
    pv = p_ref[...]                              # (bs, H + 11, 7W)

    def tap(kh):
        return pv[:, _PT - 3 + kh:_PT - 3 + kh + H, kh * W:(kh + 1) * W]

    a0 = tap(0) + b_ref[2]                       # fused 7x7 bias folded here
    a1 = tap(1)
    a2 = tap(2)
    a3 = tap(3)
    a0 = a0 + tap(4)
    a1 = a1 + tap(5)
    a2 = a2 + tap(6)
    conv = (a0 + a1) + (a2 + a3)                 # (bs, H, W)

    out_ref[...] = jax.nn.sigmoid(conv).astype(out_ref.dtype)


def spatial_attention_gate(g, x, params):
    """g: (N, F_g, H, W), x: (N, F_l, H, W) -> (N, 1, H, W)."""
    w1g, b1g, w7g, b7g, w1x, b1x, w7x, b7x = params
    N, Cg, H, W = g.shape
    _, Cx, _, _ = x.shape

    w1g = jnp.asarray(w1g, jnp.float32).reshape(Cg)
    w1x = jnp.asarray(w1x, jnp.float32).reshape(Cx)
    w7g = jnp.asarray(w7g, jnp.float32).reshape(3, 7, 7)
    w7x = jnp.asarray(w7x, jnp.float32).reshape(3, 7, 7)

    # Fused 6-channel 7x7 weights -> banded Toeplitz matrices implementing the
    # W-direction of the conv (zero padding folded into the band):
    #   t[c, w, kh*W + j] = wt[c, kh, w - j + 3]  when |w - j| <= 3, else 0.
    wt = jnp.concatenate([w7g, w7x], axis=0)                  # (6, 7, 7)
    jj = jnp.arange(W)[:, None]
    ww = jnp.arange(W)[None, :]
    kw = jj - ww + 3                                          # (W, W)
    valid = (kw >= 0) & (kw < 7)
    t = jnp.where(valid[None, None], wt[:, :, jnp.clip(kw, 0, 6)], 0.0)
    t = jnp.transpose(t, (0, 2, 1, 3)).reshape(6, W, 7 * W).astype(jnp.bfloat16)

    biases = jnp.array([b1g, b1x, b7g + b7x], jnp.float32)

    # Free merge-reshape (NOT a transpose): keeps the NCHW HBM layout.
    g3 = g.reshape(N, Cg * H, W)
    x3 = x.reshape(N, Cx * H, W)

    # Batch-block size from a per-step VMEM footprint estimate (double-buffered
    # inputs + output + scratch), against a conservative per-device budget.
    try:
        vmem_bytes = pltpu.get_tpu_info().vmem_capacity_bytes
    except Exception:
        vmem_bytes = 64 * 1024 * 1024
    budget = vmem_bytes // 8
    per_elem = 2 * (Cg * H * W * g.dtype.itemsize + Cx * H * W * x.dtype.itemsize)
    per_elem += (H + _PT + 3) * 7 * W * 4        # scratch
    per_elem += 2 * H * W * 4                    # output (double-buffered)
    bs = 1
    for d in range(1, N + 1):
        if N % d != 0 or d * per_elem > budget:
            continue
        if N >= 8 and N // d < 2:                # keep >=2 steps for big batches
            continue
        bs = d
    nsteps = N // bs

    out = pl.pallas_call(
        _sag_kernel,
        out_shape=jax.ShapeDtypeStruct((N, H, W), jnp.float32),
        grid=(nsteps,),
        in_specs=[
            pl.BlockSpec((bs, Cg * H, W), lambda b: (b, 0, 0)),
            pl.BlockSpec((bs, Cx * H, W), lambda b: (b, 0, 0)),
            pl.BlockSpec((6, W, 7 * W), lambda b: (0, 0, 0)),
            pl.BlockSpec(memory_space=pltpu.MemorySpace.SMEM),
            pl.BlockSpec(memory_space=pltpu.MemorySpace.SMEM),
            pl.BlockSpec(memory_space=pltpu.MemorySpace.SMEM),
        ],
        out_specs=pl.BlockSpec((bs, H, W), lambda b: (b, 0, 0)),
        scratch_shapes=[pltpu.VMEM((bs, H + _PT + 3, 7 * W), jnp.float32)],
        compiler_params=pltpu.CompilerParams(dimension_semantics=("parallel",)),
    )(g3, x3, t, w1g, w1x, biases)

    return out.reshape(N, 1, H, W)


def spatial_attention_gate_ref(g, x, params):
    """Pure-JAX reference matching the PyTorch module semantics."""
    w1g, b1g, w7g, b7g, w1x, b1x, w7x, b7x = params

    def define(inp, w1, b1, w7, b7):
        avg = jnp.mean(inp, axis=1, keepdims=True)
        mx = jnp.max(inp, axis=1, keepdims=True)
        c1 = jnp.einsum('nchw,c->nhw', inp, w1,
                        precision=lax.Precision.HIGHEST)[:, None] + b1
        cat = jnp.concatenate([avg, mx, c1], axis=1)
        out = lax.conv_general_dilated(
            cat, w7[None], window_strides=(1, 1), padding=((3, 3), (3, 3)),
            dimension_numbers=('NCHW', 'OIHW', 'NCHW'),
            precision=lax.Precision.HIGHEST) + b7
        return out

    g1 = define(g, w1g, b1g, w7g, b7g)
    x1 = define(x, w1x, b1x, w7x, b7x)
    return jax.nn.sigmoid(g1 + x1)


if __name__ == "__main__":
    key = jax.random.PRNGKey(0)
    keys = jax.random.split(key, 8)

    N, Fg, Fl, H, W = 2, 4, 4, 16, 16

    g = jax.random.normal(keys[0], (N, Fg, H, W), jnp.float32)
    x = jax.random.normal(keys[1], (N, Fl, H, W), jnp.float32)

    # Parameter shapes follow the nn.Conv2d defs:
    #   conv1: Conv2d(C, 1, 1x1) -> weight (C,), bias scalar
    #   conv : Conv2d(3, 1, 7x7) -> weight (3, 7, 7), bias scalar
    w1g = jax.random.normal(keys[2], (Fg,), jnp.float32) * 0.5
    b1g = 0.10
    w7g = jax.random.normal(keys[3], (3, 7, 7), jnp.float32) * 0.1
    b7g = -0.05
    w1x = jax.random.normal(keys[4], (Fl,), jnp.float32) * 0.5
    b1x = -0.20
    w7x = jax.random.normal(keys[5], (3, 7, 7), jnp.float32) * 0.1
    b7x = 0.03
    params = (w1g, b1g, w7g, b7g, w1x, b1x, w7x, b7x)

    out = spatial_attention_gate(g, x, params)
    jax.block_until_ready(out)

    ref = spatial_attention_gate_ref(g, x, params)
    assert out.shape == (N, 1, H, W), out.shape
    err = float(jnp.max(jnp.abs(out - ref)))
    # bf16 MXU operands (single-pass matmul) -> relaxed tolerance on a [0,1] gate.
    assert err < 3e-2, err

    print("KERNEL_OK")
</pallas_src>

<mosaic_0001>
module attributes {stable_mosaic.version = 11 : i64} {
  func.func @_sag_kernel(%arg0: i32, %arg1: memref<2x64x16xf32, #tpu.memory_space<vmem>>, %arg2: memref<2x64x16xf32, #tpu.memory_space<vmem>>, %arg3: memref<6x16x112xbf16, #tpu.memory_space<vmem>>, %arg4: memref<4xf32, #tpu.memory_space<smem>>, %arg5: memref<4xf32, #tpu.memory_space<smem>>, %arg6: memref<3xf32, #tpu.memory_space<smem>>, %arg7: memref<2x16x16xf32, #tpu.memory_space<vmem>>, %arg8: memref<2x27x112xf32, #tpu.memory_space<vmem>>) attributes {dimension_semantics = [#tpu.dimension_semantics<parallel>], iteration_bounds = array<i64: 1>, scalar_prefetch = 0 : i64, scratch_operands = 1 : i64, tpu.core_type = #tpu.core_type<tc>, window_params = [{transform_indices = @transform_0, window_bounds = array<i64: 2, 64, 16>}, {transform_indices = @transform_1, window_bounds = array<i64: 2, 64, 16>}, {pipeline_mode = #tpu.pipeline_mode<synchronous>, transform_indices = @transform_2, window_bounds = array<i64: 6, 16, 112>}, {transform_indices = @transform_3, window_bounds = array<i64: 4>}, {transform_indices = @transform_4, window_bounds = array<i64: 4>}, {transform_indices = @transform_5, window_bounds = array<i64: 3>}, {transform_indices = @transform_6, window_bounds = array<i64: 2, 16, 16>}]} {
    %c0 = arith.constant 0 : index
    %0 = memref.load %arg6[%c0] : memref<3xf32, #tpu.memory_space<smem>>
    %c0_0 = arith.constant 0 : index
    %c0_1 = arith.constant 0 : index
    %c0_2 = arith.constant 0 : index
    %1 = vector.load %arg1[%c0_0, %c0_1, %c0_2] : memref<2x64x16xf32, #tpu.memory_space<vmem>>, vector<2x16x16xf32>
    %c0_3 = arith.constant 0 : index
    %2 = memref.load %arg4[%c0_3] : memref<4xf32, #tpu.memory_space<smem>>
    %3 = vector.broadcast %2 : f32 to vector<2x16x16xf32>
    %4 = arith.mulf %1, %3 : vector<2x16x16xf32>
    %c0_4 = arith.constant 0 : index
    %c16 = arith.constant 16 : index
    %c0_5 = arith.constant 0 : index
    %5 = vector.load %arg1[%c0_4, %c16, %c0_5] : memref<2x64x16xf32, #tpu.memory_space<vmem>>, vector<2x16x16xf32>
    %c1 = arith.constant 1 : index
    %6 = memref.load %arg4[%c1] : memref<4xf32, #tpu.memory_space<smem>>
    %7 = vector.broadcast %6 : f32 to vector<2x16x16xf32>
    %8 = arith.mulf %5, %7 : vector<2x16x16xf32>
    %9 = arith.addf %1, %5 : vector<2x16x16xf32>
    %10 = arith.maximumf %1, %5 : vector<2x16x16xf32>
    %11 = arith.addf %4, %8 : vector<2x16x16xf32>
    %c0_6 = arith.constant 0 : index
    %c32 = arith.constant 32 : index
    %c0_7 = arith.constant 0 : index
    %12 = vector.load %arg1[%c0_6, %c32, %c0_7] : memref<2x64x16xf32, #tpu.memory_space<vmem>>, vector<2x16x16xf32>
    %c2 = arith.constant 2 : index
    %13 = memref.load %arg4[%c2] : memref<4xf32, #tpu.memory_space<smem>>
    %14 = vector.broadcast %13 : f32 to vector<2x16x16xf32>
    %15 = arith.mulf %12, %14 : vector<2x16x16xf32>
    %16 = arith.addf %9, %12 : vector<2x16x16xf32>
    %17 = arith.maximumf %10, %12 : vector<2x16x16xf32>
    %18 = arith.addf %11, %15 : vector<2x16x16xf32>
    %c0_8 = arith.constant 0 : index
    %c48 = arith.constant 48 : index
    %c0_9 = arith.constant 0 : index
    %19 = vector.load %arg1[%c0_8, %c48, %c0_9] : memref<2x64x16xf32, #tpu.memory_space<vmem>>, vector<2x16x16xf32>
    %c3 = arith.constant 3 : index
    %20 = memref.load %arg4[%c3] : memref<4xf32, #tpu.memory_space<smem>>
    %21 = vector.broadcast %20 : f32 to vector<2x16x16xf32>
    %22 = arith.mulf %19, %21 : vector<2x16x16xf32>
    %23 = arith.addf %16, %19 : vector<2x16x16xf32>
    %24 = arith.maximumf %17, %19 : vector<2x16x16xf32>
    %25 = arith.addf %18, %22 : vector<2x16x16xf32>
    %cst = arith.constant 2.500000e-01 : f32
    %26 = vector.broadcast %cst : f32 to vector<2x16x16xf32>
    %27 = arith.mulf %23, %26 : vector<2x16x16xf32>
    %28 = vector.broadcast %0 : f32 to vector<2x16x16xf32>
    %29 = arith.addf %25, %28 : vector<2x16x16xf32>
    %c1_10 = arith.constant 1 : index
    %30 = memref.load %arg6[%c1_10] : memref<3xf32, #tpu.memory_space<smem>>
    %c0_11 = arith.constant 0 : index
    %c0_12 = arith.constant 0 : index
    %c0_13 = arith.constant 0 : index
    %31 = vector.load %arg2[%c0_11, %c0_12, %c0_13] : memref<2x64x16xf32, #tpu.memory_space<vmem>>, vector<2x16x16xf32>
    %c0_14 = arith.constant 0 : index
    %32 = memref.load %arg5[%c0_14] : memref<4xf32, #tpu.memory_space<smem>>
    %33 = vector.broadcast %32 : f32 to vector<2x16x16xf32>
    %34 = arith.mulf %31, %33 : vector<2x16x16xf32>
    %c0_15 = arith.constant 0 : index
    %c16_16 = arith.constant 16 : index
    %c0_17 = arith.constant 0 : index
    %35 = vector.load %arg2[%c0_15, %c16_16, %c0_17] : memref<2x64x16xf32, #tpu.memory_space<vmem>>, vector<2x16x16xf32>
    %c1_18 = arith.constant 1 : index
    %36 = memref.load %arg5[%c1_18] : memref<4xf32, #tpu.memory_space<smem>>
    %37 = vector.broadcast %36 : f32 to vector<2x16x16xf32>
    %38 = arith.mulf %35, %37 : vector<2x16x16xf32>
    %39 = arith.addf %31, %35 : vector<2x16x16xf32>
    %40 = arith.maximumf %31, %35 : vector<2x16x16xf32>
    %41 = arith.addf %34, %38 : vector<2x16x16xf32>
    %c0_19 = arith.constant 0 : index
    %c32_20 = arith.constant 32 : index
    %c0_21 = arith.constant 0 : index
    %42 = vector.load %arg2[%c0_19, %c32_20, %c0_21] : memref<2x64x16xf32, #tpu.memory_space<vmem>>, vector<2x16x16xf32>
    %c2_22 = arith.constant 2 : index
    %43 = memref.load %arg5[%c2_22] : memref<4xf32, #tpu.memory_space<smem>>
    %44 = vector.broadcast %43 : f32 to vector<2x16x16xf32>
    %45 = arith.mulf %42, %44 : vector<2x16x16xf32>
    %46 = arith.addf %39, %42 : vector<2x16x16xf32>
    %47 = arith.maximumf %40, %42 : vector<2x16x16xf32>
    %48 = arith.addf %41, %45 : vector<2x16x16xf32>
    %c0_23 = arith.constant 0 : index
    %c48_24 = arith.constant 48 : index
    %c0_25 = arith.constant 0 : index
    %49 = vector.load %arg2[%c0_23, %c48_24, %c0_25] : memref<2x64x16xf32, #tpu.memory_space<vmem>>, vector<2x16x16xf32>
    %c3_26 = arith.constant 3 : index
    %50 = memref.load %arg5[%c3_26] : memref<4xf32, #tpu.memory_space<smem>>
    %51 = vector.broadcast %50 : f32 to vector<2x16x16xf32>
    %52 = arith.mulf %49, %51 : vector<2x16x16xf32>
    %53 = arith.addf %46, %49 : vector<2x16x16xf32>
    %54 = arith.maximumf %47, %49 : vector<2x16x16xf32>
    %55 = arith.addf %48, %52 : vector<2x16x16xf32>
    %cst_27 = arith.constant 2.500000e-01 : f32
    %56 = vector.broadcast %cst_27 : f32 to vector<2x16x16xf32>
    %57 = arith.mulf %53, %56 : vector<2x16x16xf32>
    %58 = vector.broadcast %30 : f32 to vector<2x16x16xf32>
    %59 = arith.addf %55, %58 : vector<2x16x16xf32>
    %60 = vector.shape_cast %27 : vector<2x16x16xf32> to vector<32x16xf32>
    %61 = arith.truncf %60 : vector<32x16xf32> to vector<32x16xbf16>
    %c0_28 = arith.constant 0 : index
    %c0_29 = arith.constant 0 : index
    %c0_30 = arith.constant 0 : index
    %62 = vector.load %arg3[%c0_28, %c0_29, %c0_30] : memref<6x16x112xbf16, #tpu.memory_space<vmem>>, vector<1x16x112xbf16>
    %63 = vector.shape_cast %62 : vector<1x16x112xbf16> to vector<16x112xbf16>
    %cst_31 = arith.constant dense<0.000000e+00> : vector<32x112xf32>
    %64 = tpu.matmul %61, %63, %cst_31 {dimension_numbers = #tpu.dot_dimension_numbers<[1], [0], [0], [1], [0, 0, 1, 1], [], []>} : vector<32x16xbf16>, vector<16x112xbf16>, vector<32x112xf32> -> vector<32x112xf32>
    %65 = vector.shape_cast %29 : vector<2x16x16xf32> to vector<32x16xf32>
    %66 = arith.truncf %65 : vector<32x16xf32> to vector<32x16xbf16>
    %c2_32 = arith.constant 2 : index
    %c0_33 = arith.constant 0 : index
    %c0_34 = arith.constant 0 : index
    %67 = vector.load %arg3[%c2_32, %c0_33, %c0_34] : memref<6x16x112xbf16, #tpu.memory_space<vmem>>, vector<1x16x112xbf16>
    %68 = vector.shape_cast %67 : vector<1x16x112xbf16> to vector<16x112xbf16>
    %cst_35 = arith.constant dense<0.000000e+00> : vector<32x112xf32>
    %69 = tpu.matmul %66, %68, %cst_35 {dimension_numbers = #tpu.dot_dimension_numbers<[1], [0], [0], [1], [0, 0, 1, 1], [], []>} : vector<32x16xbf16>, vector<16x112xbf16>, vector<32x112xf32> -> vector<32x112xf32>
    %70 = arith.addf %64, %69 : vector<32x112xf32>
    %71 = vector.shape_cast %54 : vector<2x16x16xf32> to vector<32x16xf32>
    %72 = arith.truncf %71 : vector<32x16xf32> to vector<32x16xbf16>
    %c4 = arith.constant 4 : index
    %c0_36 = arith.constant 0 : index
    %c0_37 = arith.constant 0 : index
    %73 = vector.load %arg3[%c4, %c0_36, %c0_37] : memref<6x16x112xbf16, #tpu.memory_space<vmem>>, vector<1x16x112xbf16>
    %74 = vector.shape_cast %73 : vector<1x16x112xbf16> to vector<16x112xbf16>
    %cst_38 = arith.constant dense<0.000000e+00> : vector<32x112xf32>
    %75 = tpu.matmul %72, %74, %cst_38 {dimension_numbers = #tpu.dot_dimension_numbers<[1], [0], [0], [1], [0, 0, 1, 1], [], []>} : vector<32x16xbf16>, vector<16x112xbf16>, vector<32x112xf32> -> vector<32x112xf32>
    %76 = arith.addf %70, %75 : vector<32x112xf32>
    %77 = vector.shape_cast %24 : vector<2x16x16xf32> to vector<32x16xf32>
    %78 = arith.truncf %77 : vector<32x16xf32> to vector<32x16xbf16>
    %c1_39 = arith.constant 1 : index
    %c0_40 = arith.constant 0 : index
    %c0_41 = arith.constant 0 : index
    %79 = vector.load %arg3[%c1_39, %c0_40, %c0_41] : memref<6x16x112xbf16, #tpu.memory_space<vmem>>, vector<1x16x112xbf16>
    %80 = vector.shape_cast %79 : vector<1x16x112xbf16> to vector<16x112xbf16>
    %cst_42 = arith.constant dense<0.000000e+00> : vector<32x112xf32>
    %81 = tpu.matmul %78, %80, %cst_42 {dimension_numbers = #tpu.dot_dimension_numbers<[1], [0], [0], [1], [0, 0, 1, 1], [], []>} : vector<32x16xbf16>, vector<16x112xbf16>, vector<32x112xf32> -> vector<32x112xf32>
    %82 = vector.shape_cast %57 : vector<2x16x16xf32> to vector<32x16xf32>
    %83 = arith.truncf %82 : vector<32x16xf32> to vector<32x16xbf16>
    %c3_43 = arith.constant 3 : index
    %c0_44 = arith.constant 0 : index
    %c0_45 = arith.constant 0 : index
    %84 = vector.load %arg3[%c3_43, %c0_44, %c0_45] : memref<6x16x112xbf16, #tpu.memory_space<vmem>>, vector<1x16x112xbf16>
    %85 = vector.shape_cast %84 : vector<1x16x112xbf16> to vector<16x112xbf16>
    %cst_46 = arith.constant dense<0.000000e+00> : vector<32x112xf32>
    %86 = tpu.matmul %83, %85, %cst_46 {dimension_numbers = #tpu.dot_dimension_numbers<[1], [0], [0], [1], [0, 0, 1, 1], [], []>} : vector<32x16xbf16>, vector<16x112xbf16>, vector<32x112xf32> -> vector<32x112xf32>
    %87 = arith.addf %81, %86 : vector<32x112xf32>
    %88 = vector.shape_cast %59 : vector<2x16x16xf32> to vector<32x16xf32>
    %89 = arith.truncf %88 : vector<32x16xf32> to vector<32x16xbf16>
    %c5 = arith.constant 5 : index
    %c0_47 = arith.constant 0 : index
    %c0_48 = arith.constant 0 : index
    %90 = vector.load %arg3[%c5, %c0_47, %c0_48] : memref<6x16x112xbf16, #tpu.memory_space<vmem>>, vector<1x16x112xbf16>
    %91 = vector.shape_cast %90 : vector<1x16x112xbf16> to vector<16x112xbf16>
    %cst_49 = arith.constant dense<0.000000e+00> : vector<32x112xf32>
    %92 = tpu.matmul %89, %91, %cst_49 {dimension_numbers = #tpu.dot_dimension_numbers<[1], [0], [0], [1], [0, 0, 1, 1], [], []>} : vector<32x16xbf16>, vector<16x112xbf16>, vector<32x112xf32> -> vector<32x112xf32>
    %93 = arith.addf %87, %92 : vector<32x112xf32>
    %94 = arith.addf %76, %93 : vector<32x112xf32>
    %95 = vector.shape_cast %94 : vector<32x112xf32> to vector<2x16x112xf32>
    %cst_50 = arith.constant 0.000000e+00 : f32
    %96 = vector.broadcast %cst_50 : f32 to vector<2x8x112xf32>
    %c0_51 = arith.constant 0 : index
    %c0_52 = arith.constant 0 : index
    %c0_53 = arith.constant 0 : index
    %97 = vector.load %arg8[%c0_51, %c0_52, %c0_53] : memref<2x27x112xf32, #tpu.memory_space<vmem>>, vector<2x8x112xf32>
    tpu.vector_store %arg8[%c0_51, %c0_52, %c0_53], %96 {strides = array<i32>} : memref<2x27x112xf32, #tpu.memory_space<vmem>>, vector<2x8x112xf32>,
    %cst_54 = arith.constant 0.000000e+00 : f32
    %98 = vector.broadcast %cst_54 : f32 to vector<2x3x112xf32>
    %c0_55 = arith.constant 0 : index
    %c24 = arith.constant 24 : index
    %c0_56 = arith.constant 0 : index
    %99 = vector.load %arg8[%c0_55, %c24, %c0_56] : memref<2x27x112xf32, #tpu.memory_space<vmem>>, vector<2x3x112xf32>
    tpu.vector_store %arg8[%c0_55, %c24, %c0_56], %98 {strides = array<i32>} : memref<2x27x112xf32, #tpu.memory_space<vmem>>, vector<2x3x112xf32>,
    %c0_57 = arith.constant 0 : index
    %c8 = arith.constant 8 : index
    %c0_58 = arith.constant 0 : index
    %100 = vector.load %arg8[%c0_57, %c8, %c0_58] : memref<2x27x112xf32, #tpu.memory_space<vmem>>, vector<2x16x112xf32>
    tpu.vector_store %arg8[%c0_57, %c8, %c0_58], %95 {strides = array<i32>} : memref<2x27x112xf32, #tpu.memory_space<vmem>>, vector<2x16x112xf32>,
    %c0_59 = arith.constant 0 : index
    %c0_60 = arith.constant 0 : index
    %c0_61 = arith.constant 0 : index
    %101 = vector.load %arg8[%c0_59, %c0_60, %c0_61] : memref<2x27x112xf32, #tpu.memory_space<vmem>>, vector<2x27x112xf32>
    %102 = vector.extract_strided_slice %101 {offsets = [0, 5, 0], sizes = [2, 16, 16], strides = [1, 1, 1]} : vector<2x27x112xf32> to vector<2x16x16xf32>
    %c2_62 = arith.constant 2 : index
    %103 = memref.load %arg6[%c2_62] : memref<3xf32, #tpu.memory_space<smem>>
    %104 = vector.broadcast %103 : f32 to vector<2x16x16xf32>
    %105 = arith.addf %102, %104 : vector<2x16x16xf32>
    %106 = vector.extract_strided_slice %101 {offsets = [0, 6, 16], sizes = [2, 16, 16], strides = [1, 1, 1]} : vector<2x27x112xf32> to vector<2x16x16xf32>
    %107 = vector.extract_strided_slice %101 {offsets = [0, 7, 32], sizes = [2, 16, 16], strides = [1, 1, 1]} : vector<2x27x112xf32> to vector<2x16x16xf32>
    %108 = vector.extract_strided_slice %101 {offsets = [0, 8, 48], sizes = [2, 16, 16], strides = [1, 1, 1]} : vector<2x27x112xf32> to vector<2x16x16xf32>
    %109 = vector.extract_strided_slice %101 {offsets = [0, 9, 64], sizes = [2, 16, 16], strides = [1, 1, 1]} : vector<2x27x112xf32> to vector<2x16x16xf32>
    %110 = arith.addf %105, %109 : vector<2x16x16xf32>
    %111 = vector.extract_strided_slice %101 {offsets = [0, 10, 80], sizes = [2, 16, 16], strides = [1, 1, 1]} : vector<2x27x112xf32> to vector<2x16x16xf32>
    %112 = arith.addf %106, %111 : vector<2x16x16xf32>
    %113 = vector.extract_strided_slice %101 {offsets = [0, 11, 96], sizes = [2, 16, 16], strides = [1, 1, 1]} : vector<2x27x112xf32> to vector<2x16x16xf32>
    %114 = arith.addf %107, %113 : vector<2x16x16xf32>
    %115 = arith.addf %110, %112 : vector<2x16x16xf32>
    %116 = arith.addf %114, %108 : vector<2x16x16xf32>
    %117 = arith.addf %115, %116 : vector<2x16x16xf32>
    %118 = arith.negf %117 : vector<2x16x16xf32>
    %119 = math.exp %118 : vector<2x16x16xf32>
    %cst_63 = arith.constant 1.000000e+00 : f32
    %120 = vector.broadcast %cst_63 : f32 to vector<2x16x16xf32>
    %121 = arith.addf %120, %119 : vector<2x16x16xf32>
    %122 = arith.divf %120, %121 : vector<2x16x16xf32>
    %c0_64 = arith.constant 0 : index
    %c0_65 = arith.constant 0 : index
    %c0_66 = arith.constant 0 : index
    %123 = vector.load %arg7[%c0_64, %c0_65, %c0_66] : memref<2x16x16xf32, #tpu.memory_space<vmem>>, vector<2x16x16xf32>
    tpu.vector_store %arg7[%c0_64, %c0_65, %c0_66], %122 {strides = array<i32>} : memref<2x16x16xf32, #tpu.memory_space<vmem>>, vector<2x16x16xf32>,
    return
  }
  func.func @transform_0(%arg0: i32) -> (i32, i32, i32) {
    %c0_i32 = arith.constant 0 : i32
    %c0_i32_0 = arith.constant 0 : i32
    %c0_i32_1 = arith.constant 0 : i32
    return %arg0, %c0_i32, %c0_i32_0 : i32, i32, i32
  }
  func.func @transform_1(%arg0: i32) -> (i32, i32, i32) {
    %c0_i32 = arith.constant 0 : i32
    %c0_i32_0 = arith.constant 0 : i32
    %c0_i32_1 = arith.constant 0 : i32
    return %arg0, %c0_i32, %c0_i32_0 : i32, i32, i32
  }
  func.func @transform_2(%arg0: i32) -> (i32, i32, i32) {
    %c0_i32 = arith.constant 0 : i32
    %c0_i32_0 = arith.constant 0 : i32
    %c0_i32_1 = arith.constant 0 : i32
    %c0_i32_2 = arith.constant 0 : i32
    return %c0_i32, %c0_i32_0, %c0_i32_1 : i32, i32, i32
  }
  func.func @transform_3(%arg0: i32) -> i32 {
    %c0_i32 = arith.constant 0 : i32
    %c0_i32_0 = arith.constant 0 : i32
    return %c0_i32 : i32
  }
  func.func @transform_4(%arg0: i32) -> i32 {
    %c0_i32 = arith.constant 0 : i32
    %c0_i32_0 = arith.constant 0 : i32
    return %c0_i32 : i32
  }
  func.func @transform_5(%arg0: i32) -> i32 {
    %c0_i32 = arith.constant 0 : i32
    %c0_i32_0 = arith.constant 0 : i32
    return %c0_i32 : i32
  }
  func.func @transform_6(%arg0: i32) -> (i32, i32, i32) {
    %c0_i32 = arith.constant 0 : i32
    %c0_i32_0 = arith.constant 0 : i32
    %c0_i32_1 = arith.constant 0 : i32
    return %arg0, %c0_i32, %c0_i32_0 : i32, i32, i32
  }
}

</mosaic_0001>

<llo_original>
// kernel: tpu_custom_call.1
$region0: #{tpu_custom_call.1}
  #allocation0 [shape = 'u32[]', space=smem, size = 0x4, offset = 0x4, fixed_abs, tag = 'smem constant byte address 0x4 - core index']
  #allocation1 [shape = 'u32[144,128]{1,0:T(1,128)}', space=vmem, size = 0x12000, scoped, tag = 'internal scratch']
  #allocation2 [shape = 'f32[2,27,112]{2,1,0:T(8,128)}', space=vmem, size = 0x8000, scoped, tag = 'scratch operand']
  %s0 = inlined_call_operand.vmem [shape: f32[2,64,16], index: 0, kind: input, shape index: {}]
  %s1 = inlined_call_operand.vmem [shape: f32[2,64,16], index: 1, kind: input, shape index: {}]
  %s2 = inlined_call_operand.vmem [shape: bf16[6,16,112], index: 2, kind: input, shape index: {}]
  %s3 = inlined_call_operand.vmem [shape: f32[4], index: 3, kind: input, shape index: {}]
  %s4 = inlined_call_operand.vmem [shape: f32[4], index: 4, kind: input, shape index: {}]
  %s5 = inlined_call_operand.vmem [shape: f32[3], index: 5, kind: input, shape index: {}]
  %s6 = inlined_call_operand.hbm [shape: f32[2,16,16], index: 6, kind: output, shape index: {}]
  %s7 = sld [smem:[#allocation0]]
  $region46: #{tpu_custom_call.1} parent=0
    _
  %s9 = ssub.s32 1, %s7
  %s10 = scalar_select 0, %s9, %s7
  $region1: #{tpu_custom_call.1} parent=0
    #allocation3 [shape = 'u8[512]{0}', space=smem, size = 0x200, scoped, tag = 'input window, operand 3, single buffered']
    #allocation4 [shape = 's32[1]{0}', space=sflag, size = 0x4, scoped, tag = 'scoped memory for tpu_custom_call.1']
    #allocation5 [shape = 's32[1]{0}', space=sflag, size = 0x4, scoped, tag = 'scoped memory for tpu_custom_call.1']
    #allocation6 [shape = 'u8[512]{0}', space=smem, size = 0x200, scoped, tag = 'input window, operand 4, single buffered']
    #allocation7 [shape = 's32[1]{0}', space=sflag, size = 0x4, scoped, tag = 'scoped memory for tpu_custom_call.1']
    #allocation8 [shape = 'u8[512]{0}', space=smem, size = 0x200, scoped, tag = 'input window, operand 5, single buffered']
    #allocation9 [shape = 'u8[16384]{0}', space=vmem, size = 0x4000, scoped, tag = 'output window, operand 0, single buffered']
    %11 = vsyncpa [#allocation5], 0
    %12 = vsyncpa [#allocation7], 0
    %13 = vsyncpa [#allocation4], 0
    // Predicated region
    $region2: #{tpu_custom_call.1} parent=1 // pred_check
      _
    $region3: #{tpu_custom_call.1} parent=1 // pred_check_branch
      %15 = sbr.rel (0) target = $region5
    $region4: #{tpu_custom_call.1} parent=1 // pred_region
      _
    $region5: #{tpu_custom_call.1} parent=1 // pred_fallthru
      _
    // Predicated region
    $region6: #{tpu_custom_call.1} parent=1 // pred_check
      _
    $region7: #{tpu_custom_call.1} parent=1 // pred_check_branch
      %17 = sbr.rel (0) target = $region9
    $region8: #{tpu_custom_call.1} parent=1 // pred_region
      _
    $region9: #{tpu_custom_call.1} parent=1 // pred_fallthru
      _
    // Predicated region
    $region10: #{tpu_custom_call.1} parent=1 // pred_check
      _
    $region11: #{tpu_custom_call.1} parent=1 // pred_check_branch
      %19 = sbr.rel (0) target = $region13
    $region12: #{tpu_custom_call.1} parent=1 // pred_region
      _
    $region13: #{tpu_custom_call.1} parent=1 // pred_fallthru
      _
    // Predicated region
    $region14: #{tpu_custom_call.1} parent=1 // pred_check
      _
    $region15: #{tpu_custom_call.1} parent=1 // pred_check_branch
      %21 = sbr.rel (0) target = $region17
    $region16: #{tpu_custom_call.1} parent=1 // pred_region
      %s23 = ssub.s32 16, 16
      %24 = vsyncadd [#allocation5], %s23
      %s26 = sshll.u32 %s3, 4
      %s27 = int_to_ptr.vmem [resolvable:$true] %s26
      %29 = dma.vmem_to_smem %s27, 16, [#allocation3], [#allocation5]
    $region17: #{tpu_custom_call.1} parent=1 // pred_fallthru
      _
    // Predicated region
    $region18: #{tpu_custom_call.1} parent=1 // pred_check
      _
    $region19: #{tpu_custom_call.1} parent=1 // pred_check_branch
      %31 = sbr.rel (0) target = $region21
    $region20: #{tpu_custom_call.1} parent=1 // pred_region
      %s33 = ssub.s32 16, 16
      %34 = vsyncadd [#allocation7], %s33
      %s36 = sshll.u32 %s4, 4
      %s37 = int_to_ptr.vmem [resolvable:$true] %s36
      %39 = dma.vmem_to_smem %s37, 16, [#allocation6], [#allocation7]
    $region21: #{tpu_custom_call.1} parent=1 // pred_fallthru
      _
    // Predicated region
    $region22: #{tpu_custom_call.1} parent=1 // pred_check
      _
    $region23: #{tpu_custom_call.1} parent=1 // pred_check_branch
      %41 = sbr.rel (0) target = $region25
    $region24: #{tpu_custom_call.1} parent=1 // pred_region
      %s43 = ssub.s32 16, 16
      %44 = vsyncadd [#allocation7], %s43
      %s46 = sshll.u32 %s5, 4
      %s47 = int_to_ptr.vmem [resolvable:$true] %s46
      %49 = dma.vmem_to_smem %s47, 16, [#allocation8], [#allocation7]
    $region25: #{tpu_custom_call.1} parent=1 // pred_fallthru
      _
    // Predicated region
    $region26: #{tpu_custom_call.1} parent=1 // pred_check
      _
    $region27: #{tpu_custom_call.1} parent=1 // pred_check_branch
      %51 = sbr.rel (0) target = $region29
    $region28: #{tpu_custom_call.1} parent=1 // pred_region
      %52 = dma.done [#allocation5], 16
    $region29: #{tpu_custom_call.1} parent=1 // pred_fallthru
      _
    // Predicated region
    $region30: #{tpu_custom_call.1} parent=1 // pred_check
      _
    $region31: #{tpu_custom_call.1} parent=1 // pred_check_branch
      %54 = sbr.rel (0) target = $region33
    $region32: #{tpu_custom_call.1} parent=1 // pred_region
      %55 = dma.done [#allocation7], 16
    $region33: #{tpu_custom_call.1} parent=1 // pred_fallthru
      _
    // Predicated region
    $region34: #{tpu_custom_call.1} parent=1 // pred_check
      _
    $region35: #{tpu_custom_call.1} parent=1 // pred_check_branch
      %57 = sbr.rel (0) target = $region37
    $region36: #{tpu_custom_call.1} parent=1 // pred_region
      %58 = dma.done [#allocation7], 16
    $region37: #{tpu_custom_call.1} parent=1 // pred_fallthru
      _
    %59 = sfence
    %s61 = sld [smem:[#allocation8]]
    %v62 = vld [vmem:[%s0] sm:$0xff]
    %v63 = vld [vmem:[%s0 + $0x8] sm:$0xff]
    %v64 = vld [vmem:[%s0 + $0x40] sm:$0xff]
    %v65 = vld [vmem:[%s0 + $0x48] sm:$0xff]
    %s66 = sld [smem:[#allocation3]]
    %v67 = vstv %s66
    %v68 = vmul.f32 %v62, %v67
    %v69 = vmul.f32 %v63, %v67
    %v70 = vmul.f32 %v64, %v67
    %v71 = vmul.f32 %v65, %v67
    %v72 = vld [vmem:[%s0 + $0x10] sm:$0xff]
    %v73 = vld [vmem:[%s0 + $0x18] sm:$0xff]
    %v74 = vld [vmem:[%s0 + $0x50] sm:$0xff]
    %v75 = vld [vmem:[%s0 + $0x58] sm:$0xff]
    %s76 = sld [smem:[#allocation3 + $0x1]]
    %v77 = vstv %s76
    %v78 = vmul.f32 %v72, %v77
    %v79 = vmul.f32 %v73, %v77
    %v80 = vmul.f32 %v74, %v77
    %v81 = vmul.f32 %v75, %v77
    %v82 = vadd.f32 %v62, %v72
    %v83 = vadd.f32 %v63, %v73
    %v84 = vadd.f32 %v64, %v74
    %v85 = vadd.f32 %v65, %v75
    %v86 = vmax.f32 %v62, %v72
    %v87 = vmax.f32 %v63, %v73
    %v88 = vmax.f32 %v64, %v74
    %v89 = vmax.f32 %v65, %v75
    %v90 = vadd.f32 %v68, %v78
    %v91 = vadd.f32 %v69, %v79
    %v92 = vadd.f32 %v70, %v80
    %v93 = vadd.f32 %v71, %v81
    %v94 = vld [vmem:[%s0 + $0x20] sm:$0xff]
    %v95 = vld [vmem:[%s0 + $0x28] sm:$0xff]
    %v96 = vld [vmem:[%s0 + $0x60] sm:$0xff]
    %v97 = vld [vmem:[%s0 + $0x68] sm:$0xff]
    %s98 = sld [smem:[#allocation3 + $0x2]]
    %v99 = vstv %s98
    %v100 = vmul.f32 %v94, %v99
    %v101 = vmul.f32 %v95, %v99
    %v102 = vmul.f32 %v96, %v99
    %v103 = vmul.f32 %v97, %v99
    %v104 = vadd.f32 %v82, %v94
    %v105 = vadd.f32 %v83, %v95
    %v106 = vadd.f32 %v84, %v96
    %v107 = vadd.f32 %v85, %v97
    %v108 = vmax.f32 %v86, %v94
    %v109 = vmax.f32 %v87, %v95
    %v110 = vmax.f32 %v88, %v96
    %v111 = vmax.f32 %v89, %v97
    %v112 = vadd.f32 %v90, %v100
    %v113 = vadd.f32 %v91, %v101
    %v114 = vadd.f32 %v92, %v102
    %v115 = vadd.f32 %v93, %v103
    %v116 = vld [vmem:[%s0 + $0x30] sm:$0xff]
    %v117 = vld [vmem:[%s0 + $0x38] sm:$0xff]
    %v118 = vld [vmem:[%s0 + $0x70] sm:$0xff]
    %v119 = vld [vmem:[%s0 + $0x78] sm:$0xff]
    %s120 = sld [smem:[#allocation3 + $0x3]]
    %v121 = vstv %s120
    %v122 = vmul.f32 %v116, %v121
    %v123 = vmul.f32 %v117, %v121
    %v124 = vmul.f32 %v118, %v121
    %v125 = vmul.f32 %v119, %v121
    %v126 = vadd.f32 %v104, %v116
    %v127 = vadd.f32 %v105, %v117
    %v128 = vadd.f32 %v106, %v118
    %v129 = vadd.f32 %v107, %v119
    %v130 = vmax.f32 %v108, %v116
    %v131 = vmax.f32 %v109, %v117
    %v132 = vmax.f32 %v110, %v118
    %v133 = vmax.f32 %v111, %v119
    %v134 = vadd.f32 %v112, %v122
    %v135 = vadd.f32 %v113, %v123
    %v136 = vadd.f32 %v114, %v124
    %v137 = vadd.f32 %v115, %v125
    %v138 = vmul.f32 %v126, 0.25
    %v139 = vmul.f32 %v127, 0.25
    %v140 = vmul.f32 %v128, 0.25
    %v141 = vmul.f32 %v129, 0.25
    %v142 = vstv %s61
    %v143 = vadd.f32 %v134, %v142
    %v144 = vadd.f32 %v135, %v142
    %v145 = vadd.f32 %v136, %v142
    %v146 = vadd.f32 %v137, %v142
    %s147 = sld [smem:[#allocation8 + $0x1]]
    %v148 = vld [vmem:[%s1] sm:$0xff]
    %v149 = vld [vmem:[%s1 + $0x8] sm:$0xff]
    %v150 = vld [vmem:[%s1 + $0x40] sm:$0xff]
    %v151 = vld [vmem:[%s1 + $0x48] sm:$0xff]
    %s152 = sld [smem:[#allocation6]]
    %v153 = vstv %s152
    %v154 = vmul.f32 %v148, %v153
    %v155 = vmul.f32 %v149, %v153
    %v156 = vmul.f32 %v150, %v153
    %v157 = vmul.f32 %v151, %v153
    %v158 = vld [vmem:[%s1 + $0x10] sm:$0xff]
    %v159 = vld [vmem:[%s1 + $0x18] sm:$0xff]
    %v160 = vld [vmem:[%s1 + $0x50] sm:$0xff]
    %v161 = vld [vmem:[%s1 + $0x58] sm:$0xff]
    %s162 = sld [smem:[#allocation6 + $0x1]]
    %v163 = vstv %s162
    %v164 = vmul.f32 %v158, %v163
    %v165 = vmul.f32 %v159, %v163
    %v166 = vmul.f32 %v160, %v163
    %v167 = vmul.f32 %v161, %v163
    %v168 = vadd.f32 %v148, %v158
    %v169 = vadd.f32 %v149, %v159
    %v170 = vadd.f32 %v150, %v160
    %v171 = vadd.f32 %v151, %v161
    %v172 = vmax.f32 %v148, %v158
    %v173 = vmax.f32 %v149, %v159
    %v174 = vmax.f32 %v150, %v160
    %v175 = vmax.f32 %v151, %v161
    %v176 = vadd.f32 %v154, %v164
    %v177 = vadd.f32 %v155, %v165
    %v178 = vadd.f32 %v156, %v166
    %v179 = vadd.f32 %v157, %v167
    %v180 = vld [vmem:[%s1 + $0x20] sm:$0xff]
    %v181 = vld [vmem:[%s1 + $0x28] sm:$0xff]
    %v182 = vld [vmem:[%s1 + $0x60] sm:$0xff]
    %v183 = vld [vmem:[%s1 + $0x68] sm:$0xff]
    %s184 = sld [smem:[#allocation6 + $0x2]]
    %v185 = vstv %s184
    %v186 = vmul.f32 %v180, %v185
    %v187 = vmul.f32 %v181, %v185
    %v188 = vmul.f32 %v182, %v185
    %v189 = vmul.f32 %v183, %v185
    %v190 = vadd.f32 %v168, %v180
    %v191 = vadd.f32 %v169, %v181
    %v192 = vadd.f32 %v170, %v182
    %v193 = vadd.f32 %v171, %v183
    %v194 = vmax.f32 %v172, %v180
    %v195 = vmax.f32 %v173, %v181
    %v196 = vmax.f32 %v174, %v182
    %v197 = vmax.f32 %v175, %v183
    %v198 = vadd.f32 %v176, %v186
    %v199 = vadd.f32 %v177, %v187
    %v200 = vadd.f32 %v178, %v188
    %v201 = vadd.f32 %v179, %v189
    %v202 = vld [vmem:[%s1 + $0x30] sm:$0xff]
    %v203 = vld [vmem:[%s1 + $0x38] sm:$0xff]
    %v204 = vld [vmem:[%s1 + $0x70] sm:$0xff]
    %v205 = vld [vmem:[%s1 + $0x78] sm:$0xff]
    %s206 = sld [smem:[#allocation6 + $0x3]]
    %v207 = vstv %s206
    %v208 = vmul.f32 %v202, %v207
    %v209 = vmul.f32 %v203, %v207
    %v210 = vmul.f32 %v204, %v207
    %v211 = vmul.f32 %v205, %v207
    %v212 = vadd.f32 %v190, %v202
    %v213 = vadd.f32 %v191, %v203
    %v214 = vadd.f32 %v192, %v204
    %v215 = vadd.f32 %v193, %v205
    %v216 = vmax.f32 %v194, %v202
    %v217 = vmax.f32 %v195, %v203
    %v218 = vmax.f32 %v196, %v204
    %v219 = vmax.f32 %v197, %v205
    %v220 = vadd.f32 %v198, %v208
    %v221 = vadd.f32 %v199, %v209
    %v222 = vadd.f32 %v200, %v210
    %v223 = vadd.f32 %v201, %v211
    %v224 = vmul.f32 %v212, 0.25
    %v225 = vmul.f32 %v213, 0.25
    %v226 = vmul.f32 %v214, 0.25
    %v227 = vmul.f32 %v215, 0.25
    %v228 = vstv %s147
    %v229 = vadd.f32 %v220, %v228
    %v230 = vadd.f32 %v221, %v228
    %v231 = vadd.f32 %v222, %v228
    %v232 = vadd.f32 %v223, %v228
    %v233 = vpack.c.bf16 %v139, %v138
    %v234 = vpack.c.bf16 %v141, %v140
    %v235 = vld [vmem:[%s2] sm:$0xf]
    %v236 = vld [vmem:[%s2 + $0x4] sm:$0xf]
    %v237 = vpack.c.bf16 %v144, %v143
    %v238 = vpack.c.bf16 %v146, %v145
    %s239 = scalar_lea.vmem %s2, 16
    %v240 = vld [vmem:[%s239] sm:$0xf]
    %v241 = vld [vmem:[%s239 + $0x4] sm:$0xf]
    %v244 = vunpack.c.l.b16 %v240
    %v245 = vunpack.c.l.b16 %v241
    %v246 = vpack.c.b16 %v245, %v244
    %vm248 = vcmask 130048
    %v250 = vsel %vm248, %v237, 0
    %v253 = vsel %vm248, %v238, 0
    %255 = vmatprep.subr.bf16.mxu0 0
    %256 = vmatpush1.bf16.msra.mxu0 0
    %257 = vmatprep.subr.bf16.mxu0 0
    %258 = vmatpush1.bf16.msra.mxu0 0
    %259 = vmatprep.subr.bf16.mxu0 0
    %260 = vmatpush1.bf16.msra.mxu0 0
    %261 = vmatprep.subr.bf16.mxu0 0
    %262 = vmatpush1.bf16.msra.mxu0 0
    %263 = vmatprep.subr.bf16.mxu0 0
    %264 = vmatpush1.bf16.msra.mxu0 0
    %265 = vmatprep.subr.bf16.mxu0 0
    %266 = vmatpush1.bf16.msra.mxu0 0
    %267 = vmatprep.subr.bf16.mxu0 0
    %268 = vmatpush1.bf16.msra.mxu0 0
    %269 = vmatprep.subr.bf16.mxu0 0
    %270 = vmatpush1.bf16.msra.mxu0 %v246
    %271 = vmatprep.subr.bf16.mxu0 0
    %272 = vmatpush2.bf16.msra.mxu0 0
    %273 = vmatprep.subr.bf16.mxu0 0
    %274 = vmatpush2.bf16.msra.mxu0 0
    %275 = vmatprep.subr.bf16.mxu0 0
    %276 = vmatpush2.bf16.msra.mxu0 0
    %277 = vmatprep.subr.bf16.mxu0 0
    %278 = vmatpush2.bf16.msra.mxu0 0
    %279 = vmatprep.subr.bf16.mxu0 0
    %280 = vmatpush2.bf16.msra.mxu0 0
    %281 = vmatprep.subr.bf16.mxu0 0
    %282 = vmatpush2.bf16.msra.mxu0 0
    %283 = vmatprep.subr.bf16.mxu0 0
    %284 = vmatpush2.bf16.msra.mxu0 0
    %285 = vmatprep.subr.bf16.mxu0 0
    %286 = vmatpush2.bf16.msra.mxu0 0
    %287 = vmatprep.mubr.bf16.mxu0 0
    %288 = vmatmul.mubr.bf16.gmra.mxu0 %v250
    %v289 = vpop.f32.mrf.mxu0
    %v290 = vadd.f32 0.0, %v289
    %v291 = vpop.f32.mrf.mxu0
    %v292 = vpop.f32.mrf.mxu0
    %v293 = vadd.f32 0.0, %v292
    %v294 = vpop.f32.mrf.mxu0
    %295 = vmatprep.mubr.bf16.mxu0 0
    %296 = vmatmul.mubr.bf16.gmra.mxu0 %v253
    %v297 = vpop.f32.mrf.mxu0
    %v298 = vadd.f32 0.0, %v297
    %v299 = vpop.f32.mrf.mxu0
    %v300 = vpop.f32.mrf.mxu0
    %v301 = vadd.f32 0.0, %v300
    %v302 = vpop.f32.mrf.mxu0
    %303 = vdwg.mxu0
    %v306 = vunpack.c.l.b16 %v235
    %v307 = vunpack.c.l.b16 %v236
    %v308 = vpack.c.b16 %v307, %v306
    %v311 = vsel %vm248, %v233, 0
    %v314 = vsel %vm248, %v234, 0
    %316 = vmatprep.subr.bf16.mxu0 0
    %317 = vmatpush1.bf16.msra.mxu0 0
    %318 = vmatprep.subr.bf16.mxu0 0
    %319 = vmatpush1.bf16.msra.mxu0 0
    %320 = vmatprep.subr.bf16.mxu0 0
    %321 = vmatpush1.bf16.msra.mxu0 0
    %322 = vmatprep.subr.bf16.mxu0 0
    %323 = vmatpush1.bf16.msra.mxu0 0
    %324 = vmatprep.subr.bf16.mxu0 0
    %325 = vmatpush1.bf16.msra.mxu0 0
    %326 = vmatprep.subr.bf16.mxu0 0
    %327 = vmatpush1.bf16.msra.mxu0 0
    %328 = vmatprep.subr.bf16.mxu0 0
    %329 = vmatpush1.bf16.msra.mxu0 0
    %330 = vmatprep.subr.bf16.mxu0 0
    %331 = vmatpush1.bf16.msra.mxu0 %v308
    %332 = vmatprep.subr.bf16.mxu0 0
    %333 = vmatpush2.bf16.msra.mxu0 0
    %334 = vmatprep.subr.bf16.mxu0 0
    %335 = vmatpush2.bf16.msra.mxu0 0
    %336 = vmatprep.subr.bf16.mxu0 0
    %337 = vmatpush2.bf16.msra.mxu0 0
    %338 = vmatprep.subr.bf16.mxu0 0
    %339 = vmatpush2.bf16.msra.mxu0 0
    %340 = vmatprep.subr.bf16.mxu0 0
    %341 = vmatpush2.bf16.msra.mxu0 0
    %342 = vmatprep.subr.bf16.mxu0 0
    %343 = vmatpush2.bf16.msra.mxu0 0
    %344 = vmatprep.subr.bf16.mxu0 0
    %345 = vmatpush2.bf16.msra.mxu0 0
    %346 = vmatprep.subr.bf16.mxu0 0
    %347 = vmatpush2.bf16.msra.mxu0 0
    %348 = vmatprep.mubr.bf16.mxu0 0
    %349 = vmatmul.mubr.bf16.gmra.mxu0 %v311
    %v350 = vpop.f32.mrf.mxu0
    %v351 = vadd.f32 %v290, %v350
    %v352 = vpop.f32.mrf.mxu0
    %v353 = vpop.f32.mrf.mxu0
    %v354 = vadd.f32 %v293, %v353
    %v355 = vpop.f32.mrf.mxu0
    %356 = vmatprep.mubr.bf16.mxu0 0
    %357 = vmatmul.mubr.bf16.gmra.mxu0 %v314
    %v358 = vpop.f32.mrf.mxu0
    %v359 = vadd.f32 %v298, %v358
    %v360 = vpop.f32.mrf.mxu0
    %v361 = vpop.f32.mrf.mxu0
    %v362 = vadd.f32 %v301, %v361
    %v363 = vpop.f32.mrf.mxu0
    %364 = vdwg.mxu0
    %v365 = vpack.c.bf16 %v217, %v216
    %v366 = vpack.c.bf16 %v219, %v218
    %s367 = scalar_lea.vmem %s2, 32
    %v368 = vld [vmem:[%s367] sm:$0xf]
    %v369 = vld [vmem:[%s367 + $0x4] sm:$0xf]
    %v372 = vunpack.c.l.b16 %v368
    %v373 = vunpack.c.l.b16 %v369
    %v374 = vpack.c.b16 %v373, %v372
    %v377 = vsel %vm248, %v365, 0
    %v380 = vsel %vm248, %v366, 0
    %382 = vmatprep.subr.bf16.mxu0 0
    %383 = vmatpush1.bf16.msra.mxu0 0
    %384 = vmatprep.subr.bf16.mxu0 0
    %385 = vmatpush1.bf16.msra.mxu0 0
    %386 = vmatprep.subr.bf16.mxu0 0
    %387 = vmatpush1.bf16.msra.mxu0 0
    %388 = vmatprep.subr.bf16.mxu0 0
    %389 = vmatpush1.bf16.msra.mxu0 0
    %390 = vmatprep.subr.bf16.mxu0 0
    %391 = vmatpush1.bf16.msra.mxu0 0
    %392 = vmatprep.subr.bf16.mxu0 0
    %393 = vmatpush1.bf16.msra.mxu0 0
    %394 = vmatprep.subr.bf16.mxu0 0
    %395 = vmatpush1.bf16.msra.mxu0 0
    %396 = vmatprep.subr.bf16.mxu0 0
    %397 = vmatpush1.bf16.msra.mxu0 %v374
    %398 = vmatprep.subr.bf16.mxu0 0
    %399 = vmatpush2.bf16.msra.mxu0 0
    %400 = vmatprep.subr.bf16.mxu0 0
    %401 = vmatpush2.bf16.msra.mxu0 0
    %402 = vmatprep.subr.bf16.mxu0 0
    %403 = vmatpush2.bf16.msra.mxu0 0
    %404 = vmatprep.subr.bf16.mxu0 0
    %405 = vmatpush2.bf16.msra.mxu0 0
    %406 = vmatprep.subr.bf16.mxu0 0
    %407 = vmatpush2.bf16.msra.mxu0 0
    %408 = vmatprep.subr.bf16.mxu0 0
    %409 = vmatpush2.bf16.msra.mxu0 0
    %410 = vmatprep.subr.bf16.mxu0 0
    %411 = vmatpush2.bf16.msra.mxu0 0
    %412 = vmatprep.subr.bf16.mxu0 0
    %413 = vmatpush2.bf16.msra.mxu0 0
    %414 = vmatprep.mubr.bf16.mxu0 0
    %415 = vmatmul.mubr.bf16.gmra.mxu0 %v377
    %v416 = vpop.f32.mrf.mxu0
    %v417 = vadd.f32 0.0, %v416
    %v418 = vpop.f32.mrf.mxu0
    %v419 = vpop.f32.mrf.mxu0
    %v420 = vadd.f32 0.0, %v419
    %v421 = vpop.f32.mrf.mxu0
    %422 = vmatprep.mubr.bf16.mxu0 0
    %423 = vmatmul.mubr.bf16.gmra.mxu0 %v380
    %v424 = vpop.f32.mrf.mxu0
    %v425 = vadd.f32 0.0, %v424
    %v426 = vpop.f32.mrf.mxu0
    %v427 = vpop.f32.mrf.mxu0
    %v428 = vadd.f32 0.0, %v427
    %v429 = vpop.f32.mrf.mxu0
    %430 = vdwg.mxu0
    %v431 = vadd.f32 %v351, %v417
    %v432 = vadd.f32 %v354, %v420
    %v433 = vadd.f32 %v359, %v425
    %v434 = vadd.f32 %v362, %v428
    %v435 = vpack.c.bf16 %v131, %v130
    %v436 = vpack.c.bf16 %v133, %v132
    %s437 = scalar_lea.vmem %s2, 8
    %v438 = vld [vmem:[%s437] sm:$0xf]
    %v439 = vld [vmem:[%s437 + $0x4] sm:$0xf]
    %v440 = vpack.c.bf16 %v225, %v224
    %v441 = vpack.c.bf16 %v227, %v226
    %s442 = scalar_lea.vmem %s2, 24
    %v443 = vld [vmem:[%s442] sm:$0xf]
    %v444 = vld [vmem:[%s442 + $0x4] sm:$0xf]
    %v447 = vunpack.c.l.b16 %v443
    %v448 = vunpack.c.l.b16 %v444
    %v449 = vpack.c.b16 %v448, %v447
    %v452 = vsel %vm248, %v440, 0
    %v455 = vsel %vm248, %v441, 0
    %457 = vmatprep.subr.bf16.mxu0 0
    %458 = vmatpush1.bf16.msra.mxu0 0
    %459 = vmatprep.subr.bf16.mxu0 0
    %460 = vmatpush1.bf16.msra.mxu0 0
    %461 = vmatprep.subr.bf16.mxu0 0
    %462 = vmatpush1.bf16.msra.mxu0 0
    %463 = vmatprep.subr.bf16.mxu0 0
    %464 = vmatpush1.bf16.msra.mxu0 0
    %465 = vmatprep.subr.bf16.mxu0 0
    %466 = vmatpush1.bf16.msra.mxu0 0
    %467 = vmatprep.subr.bf16.mxu0 0
    %468 = vmatpush1.bf16.msra.mxu0 0
    %469 = vmatprep.subr.bf16.mxu0 0
    %470 = vmatpush1.bf16.msra.mxu0 0
    %471 = vmatprep.subr.bf16.mxu0 0
    %472 = vmatpush1.bf16.msra.mxu0 %v449
    %473 = vmatprep.subr.bf16.mxu0 0
    %474 = vmatpush2.bf16.msra.mxu0 0
    %475 = vmatprep.subr.bf16.mxu0 0
    %476 = vmatpush2.bf16.msra.mxu0 0
    %477 = vmatprep.subr.bf16.mxu0 0
    %478 = vmatpush2.bf16.msra.mxu0 0
    %479 = vmatprep.subr.bf16.mxu0 0
    %480 = vmatpush2.bf16.msra.mxu0 0
    %481 = vmatprep.subr.bf16.mxu0 0
    %482 = vmatpush2.bf16.msra.mxu0 0
    %483 = vmatprep.subr.bf16.mxu0 0
    %484 = vmatpush2.bf16.msra.mxu0 0
    %485 = vmatprep.subr.bf16.mxu0 0
    %486 = vmatpush2.bf16.msra.mxu0 0
    %487 = vmatprep.subr.bf16.mxu0 0
    %488 = vmatpush2.bf16.msra.mxu0 0
    %489 = vmatprep.mubr.bf16.mxu0 0
    %490 = vmatmul.mubr.bf16.gmra.mxu0 %v452
    %v491 = vpop.f32.mrf.mxu0
    %v492 = vadd.f32 0.0, %v491
    %v493 = vpop.f32.mrf.mxu0
    %v494 = vpop.f32.mrf.mxu0
    %v495 = vadd.f32 0.0, %v494
    %v496 = vpop.f32.mrf.mxu0
    %497 = vmatprep.mubr.bf16.mxu0 0
    %498 = vmatmul.mubr.bf16.gmra.mxu0 %v455
    %v499 = vpop.f32.mrf.mxu0
    %v500 = vadd.f32 0.0, %v499
    %v501 = vpop.f32.mrf.mxu0
    %v502 = vpop.f32.mrf.mxu0
    %v503 = vadd.f32 0.0, %v502
    %v504 = vpop.f32.mrf.mxu0
    %505 = vdwg.mxu0
    %v508 = vunpack.c.l.b16 %v438
    %v509 = vunpack.c.l.b16 %v439
    %v510 = vpack.c.b16 %v509, %v508
    %v513 = vsel %vm248, %v435, 0
    %v516 = vsel %vm248, %v436, 0
    %518 = vmatprep.subr.bf16.mxu0 0
    %519 = vmatpush1.bf16.msra.mxu0 0
    %520 = vmatprep.subr.bf16.mxu0 0
    %521 = vmatpush1.bf16.msra.mxu0 0
    %522 = vmatprep.subr.bf16.mxu0 0
    %523 = vmatpush1.bf16.msra.mxu0 0
    %524 = vmatprep.subr.bf16.mxu0 0
    %525 = vmatpush1.bf16.msra.mxu0 0
    %526 = vmatprep.subr.bf16.mxu0 0
    %527 = vmatpush1.bf16.msra.mxu0 0
    %528 = vmatprep.subr.bf16.mxu0 0
    %529 = vmatpush1.bf16.msra.mxu0 0
    %530 = vmatprep.subr.bf16.mxu0 0
    %531 = vmatpush1.bf16.msra.mxu0 0
    %532 = vmatprep.subr.bf16.mxu0 0
    %533 = vmatpush1.bf16.msra.mxu0 %v510
    %534 = vmatprep.subr.bf16.mxu0 0
    %535 = vmatpush2.bf16.msra.mxu0 0
    %536 = vmatprep.subr.bf16.mxu0 0
    %537 = vmatpush2.bf16.msra.mxu0 0
    %538 = vmatprep.subr.bf16.mxu0 0
    %539 = vmatpush2.bf16.msra.mxu0 0
    %540 = vmatprep.subr.bf16.mxu0 0
    %541 = vmatpush2.bf16.msra.mxu0 0
    %542 = vmatprep.subr.bf16.mxu0 0
    %543 = vmatpush2.bf16.msra.mxu0 0
    %544 = vmatprep.subr.bf16.mxu0 0
    %545 = vmatpush2.bf16.msra.mxu0 0
    %546 = vmatprep.subr.bf16.mxu0 0
    %547 = vmatpush2.bf16.msra.mxu0 0
    %548 = vmatprep.subr.bf16.mxu0 0
    %549 = vmatpush2.bf16.msra.mxu0 0
    %550 = vmatprep.mubr.bf16.mxu0 0
    %551 = vmatmul.mubr.bf16.gmra.mxu0 %v513
    %v552 = vpop.f32.mrf.mxu0
    %v553 = vadd.f32 %v492, %v552
    %v554 = vpop.f32.mrf.mxu0
    %v555 = vpop.f32.mrf.mxu0
    %v556 = vadd.f32 %v495, %v555
    %v557 = vpop.f32.mrf.mxu0
    %558 = vmatprep.mubr.bf16.mxu0 0
    %559 = vmatmul.mubr.bf16.gmra.mxu0 %v516
    %v560 = vpop.f32.mrf.mxu0
    %v561 = vadd.f32 %v500, %v560
    %v562 = vpop.f32.mrf.mxu0
    %v563 = vpop.f32.mrf.mxu0
    %v564 = vadd.f32 %v503, %v563
    %v565 = vpop.f32.mrf.mxu0
    %566 = vdwg.mxu0
    %v567 = vpack.c.bf16 %v230, %v229
    %v568 = vpack.c.bf16 %v232, %v231
    %s569 = scalar_lea.vmem %s2, 40
    %v570 = vld [vmem:[%s569] sm:$0xf]
    %v571 = vld [vmem:[%s569 + $0x4] sm:$0xf]
    %v574 = vunpack.c.l.b16 %v570
    %v575 = vunpack.c.l.b16 %v571
    %v576 = vpack.c.b16 %v575, %v574
    %v579 = vsel %vm248, %v567, 0
    %v582 = vsel %vm248, %v568, 0
    %584 = vmatprep.subr.bf16.mxu0 0
    %585 = vmatpush1.bf16.msra.mxu0 0
    %586 = vmatprep.subr.bf16.mxu0 0
    %587 = vmatpush1.bf16.msra.mxu0 0
    %588 = vmatprep.subr.bf16.mxu0 0
    %589 = vmatpush1.bf16.msra.mxu0 0
    %590 = vmatprep.subr.bf16.mxu0 0
    %591 = vmatpush1.bf16.msra.mxu0 0
    %592 = vmatprep.subr.bf16.mxu0 0
    %593 = vmatpush1.bf16.msra.mxu0 0
    %594 = vmatprep.subr.bf16.mxu0 0
    %595 = vmatpush1.bf16.msra.mxu0 0
    %596 = vmatprep.subr.bf16.mxu0 0
    %597 = vmatpush1.bf16.msra.mxu0 0
    %598 = vmatprep.subr.bf16.mxu0 0
    %599 = vmatpush1.bf16.msra.mxu0 %v576
    %600 = vmatprep.subr.bf16.mxu0 0
    %601 = vmatpush2.bf16.msra.mxu0 0
    %602 = vmatprep.subr.bf16.mxu0 0
    %603 = vmatpush2.bf16.msra.mxu0 0
    %604 = vmatprep.subr.bf16.mxu0 0
    %605 = vmatpush2.bf16.msra.mxu0 0
    %606 = vmatprep.subr.bf16.mxu0 0
    %607 = vmatpush2.bf16.msra.mxu0 0
    %608 = vmatprep.subr.bf16.mxu0 0
    %609 = vmatpush2.bf16.msra.mxu0 0
    %610 = vmatprep.subr.bf16.mxu0 0
    %611 = vmatpush2.bf16.msra.mxu0 0
    %612 = vmatprep.subr.bf16.mxu0 0
    %613 = vmatpush2.bf16.msra.mxu0 0
    %614 = vmatprep.subr.bf16.mxu0 0
    %615 = vmatpush2.bf16.msra.mxu0 0
    %616 = vmatprep.mubr.bf16.mxu0 0
    %617 = vmatmul.mubr.bf16.gmra.mxu0 %v579
    %v618 = vpop.f32.mrf.mxu0
    %v619 = vadd.f32 0.0, %v618
    %v620 = vpop.f32.mrf.mxu0
    %v621 = vpop.f32.mrf.mxu0
    %v622 = vadd.f32 0.0, %v621
    %v623 = vpop.f32.mrf.mxu0
    %624 = vmatprep.mubr.bf16.mxu0 0
    %625 = vmatmul.mubr.bf16.gmra.mxu0 %v582
    %v626 = vpop.f32.mrf.mxu0
    %v627 = vadd.f32 0.0, %v626
    %v628 = vpop.f32.mrf.mxu0
    %v629 = vpop.f32.mrf.mxu0
    %v630 = vadd.f32 0.0, %v629
    %v631 = vpop.f32.mrf.mxu0
    %632 = vdwg.mxu0
    %v633 = vadd.f32 %v553, %v619
    %v634 = vadd.f32 %v556, %v622
    %v635 = vadd.f32 %v561, %v627
    %v636 = vadd.f32 %v564, %v630
    %v637 = vadd.f32 %v431, %v633
    %v638 = vadd.f32 %v432, %v634
    %v639 = vadd.f32 %v433, %v635
    %v640 = vadd.f32 %v434, %v636
    %vm641 = vcmask 916480
    %642 = vst.msk [vmem:[#allocation2] sm:$0xff] %vm641, 0.0
    %643 = vst.msk [vmem:[#allocation2 + $0x20] sm:$0xff] %vm641, 0.0
    %vm644 = vcmask 911360
    %645 = vst.msk [vmem:[#allocation2 + $0x18] sm:$0x7] %vm644, 0.0
    %646 = vst.msk [vmem:[#allocation2 + $0x38] sm:$0x7] %vm644, 0.0
    %647 = vst.msk [vmem:[#allocation2 + $0x8] sm:$0xff] %vm641, %v637
    %648 = vst.msk [vmem:[#allocation2 + $0x10] sm:$0xff] %vm641, %v638
    %649 = vst.msk [vmem:[#allocation2 + $0x28] sm:$0xff] %vm641, %v639
    %650 = vst.msk [vmem:[#allocation2 + $0x30] sm:$0xff] %vm641, %v640
    %v651 = vld [vmem:[#allocation2] sm:$0xff]
    %v652 = vld [vmem:[#allocation2 + $0x8] sm:$0xff]
    %v653 = vld [vmem:[#allocation2 + $0x10] sm:$0xff]
    %v654 = vld [vmem:[#allocation2 + $0x18] sm:$0x7]
    %v655 = vld [vmem:[#allocation2 + $0x20] sm:$0xff]
    %v656 = vld [vmem:[#allocation2 + $0x28] sm:$0xff]
    %v657 = vld [vmem:[#allocation2 + $0x30] sm:$0xff]
    %v658 = vld [vmem:[#allocation2 + $0x38] sm:$0x7]
    %s659 = sld [smem:[#allocation8 + $0x2]]
    %v660 = vstv %s659
    %v661 = vadd.f32 %v651, %v660
    %v662 = vadd.f32 %v652, %v660
    %v663 = vadd.f32 %v653, %v660
    %v664 = vadd.f32 %v655, %v660
    %v665 = vadd.f32 %v656, %v660
    %v666 = vadd.f32 %v657, %v660
    %vm673 = vcmask 1043456
    %v674 = vrot.slane %v652, 4
    %v675 = vrot.slane %v653, 4
    %v676 = vsel %vm673, %v674, %v675
    %v677 = vrot.slane %v654, 4
    %v678 = vsel %vm673, %v675, %v677
    %v679 = vrot.slane %v656, 4
    %v680 = vrot.slane %v657, 4
    %v681 = vsel %vm673, %v679, %v680
    %v682 = vrot.slane %v658, 4
    %v683 = vsel %vm673, %v680, %v682
    %684 = vrot.lane.b32.xlu0 %v674, 64
    %v685 = vpop.permute.xlu0 %684
    %686 = vrot.lane.b32.xlu0 %v676, 64
    %v687 = vpop.permute.xlu0 %686
    %688 = vrot.lane.b32.xlu0 %v678, 64
    %v689 = vpop.permute.xlu0 %688
    %690 = vrot.lane.b32.xlu0 %v679, 64
    %v691 = vpop.permute.xlu0 %690
    %692 = vrot.lane.b32.xlu0 %v681, 64
    %v693 = vpop.permute.xlu0 %692
    %694 = vrot.lane.b32.xlu0 %v683, 64
    %v695 = vpop.permute.xlu0 %694
    %v702 = vadd.f32 %v661, %v685
    %v703 = vadd.f32 %v662, %v687
    %v704 = vadd.f32 %v663, %v689
    %v705 = vadd.f32 %v664, %v691
    %v706 = vadd.f32 %v665, %v693
    %v707 = vadd.f32 %v666, %v695
    %v708 = vadd.f32 %v651, %v685
    %v709 = vadd.f32 %v652, %v687
    %v710 = vadd.f32 %v653, %v689
    %v711 = vadd.f32 %v655, %v691
    %v712 = vadd.f32 %v656, %v693
    %v713 = vadd.f32 %v657, %v695
    %vm720 = vcmask 1046528
    %v721 = vrot.slane %v708, 1
    %v722 = vrot.slane %v709, 1
    %v723 = vsel %vm720, %v721, %v722
    %v724 = vrot.slane %v710, 1
    %v725 = vsel %vm720, %v722, %v724
    %v726 = vrot.slane %v711, 1
    %v727 = vrot.slane %v712, 1
    %v728 = vsel %vm720, %v726, %v727
    %v729 = vrot.slane %v713, 1
    %v730 = vsel %vm720, %v727, %v729
    %731 = vrot.lane.b32.xlu0 %v723, 112
    %v732 = vpop.permute.xlu0 %731
    %733 = vrot.lane.b32.xlu0 %v725, 112
    %v734 = vpop.permute.xlu0 %733
    %735 = vrot.lane.b32.xlu0 %v724, 112
    %v736 = vpop.permute.xlu0 %735
    %737 = vrot.lane.b32.xlu0 %v728, 112
    %v738 = vpop.permute.xlu0 %737
    %739 = vrot.lane.b32.xlu0 %v730, 112
    %v740 = vpop.permute.xlu0 %739
    %741 = vrot.lane.b32.xlu0 %v729, 112
    %v742 = vpop.permute.xlu0 %741
    %v749 = vadd.f32 %v702, %v732
    %v750 = vadd.f32 %v703, %v734
    %v751 = vadd.f32 %v704, %v736
    %v752 = vadd.f32 %v705, %v738
    %v753 = vadd.f32 %v706, %v740
    %v754 = vadd.f32 %v707, %v742
    %v755 = vrot.slane %v652, 1
    %v756 = vrot.slane %v653, 1
    %v757 = vsel %vm720, %v755, %v756
    %v758 = vrot.slane %v656, 1
    %v759 = vrot.slane %v657, 1
    %v760 = vsel %vm720, %v758, %v759
    %761 = vrot.lane.b32.xlu0 %v755, 112
    %v762 = vpop.permute.xlu0 %761
    %763 = vrot.lane.b32.xlu0 %v757, 112
    %v764 = vpop.permute.xlu0 %763
    %765 = vrot.lane.b32.xlu0 %v756, 112
    %v766 = vpop.permute.xlu0 %765
    %767 = vrot.lane.b32.xlu0 %v758, 112
    %v768 = vpop.permute.xlu0 %767
    %769 = vrot.lane.b32.xlu0 %v760, 112
    %v770 = vpop.permute.xlu0 %769
    %771 = vrot.lane.b32.xlu0 %v759, 112
    %v772 = vpop.permute.xlu0 %771
    %v779 = vadd.f32 %v708, %v762
    %v780 = vadd.f32 %v709, %v764
    %v781 = vadd.f32 %v710, %v766
    %v782 = vadd.f32 %v711, %v768
    %v783 = vadd.f32 %v712, %v770
    %v784 = vadd.f32 %v713, %v772
    %vm791 = vcmask 1045504
    %v792 = vrot.slane %v779, 2
    %v793 = vrot.slane %v780, 2
    %v794 = vsel %vm791, %v792, %v793
    %v795 = vrot.slane %v781, 2
    %v796 = vsel %vm791, %v793, %v795
    %v797 = vrot.slane %v782, 2
    %v798 = vrot.slane %v783, 2
    %v799 = vsel %vm791, %v797, %v798
    %v800 = vrot.slane %v784, 2
    %v801 = vsel %vm791, %v798, %v800
    %802 = vrot.lane.b32.xlu0 %v794, 96
    %v803 = vpop.permute.xlu0 %802
    %804 = vrot.lane.b32.xlu0 %v796, 96
    %v805 = vpop.permute.xlu0 %804
    %806 = vrot.lane.b32.xlu0 %v795, 96
    %v807 = vpop.permute.xlu0 %806
    %808 = vrot.lane.b32.xlu0 %v799, 96
    %v809 = vpop.permute.xlu0 %808
    %810 = vrot.lane.b32.xlu0 %v801, 96
    %v811 = vpop.permute.xlu0 %810
    %812 = vrot.lane.b32.xlu0 %v800, 96
    %v813 = vpop.permute.xlu0 %812
    %v820 = vadd.f32 %v749, %v803
    %v821 = vadd.f32 %v750, %v805
    %v822 = vadd.f32 %v751, %v807
    %v823 = vadd.f32 %v752, %v809
    %v824 = vadd.f32 %v753, %v811
    %v825 = vadd.f32 %v754, %v813
    %v826 = vxor.u32 %v820, 2147483648
    %v827 = vxor.u32 %v821, 2147483648
    %v828 = vxor.u32 %v822, 2147483648
    %v829 = vxor.u32 %v823, 2147483648
    %v830 = vxor.u32 %v824, 2147483648
    %v831 = vxor.u32 %v825, 2147483648
    %v832 = vmul.f32 %v826, 1.442695
    %v833 = vpow.pop %v832
    %v834 = vmul.f32 %v827, 1.442695
    %v835 = vpow.pop %v834
    %v836 = vmul.f32 %v828, 1.442695
    %v837 = vpow.pop %v836
    %v838 = vmul.f32 %v829, 1.442695
    %v839 = vpow.pop %v838
    %v840 = vmul.f32 %v830, 1.442695
    %v841 = vpow.pop %v840
    %v842 = vmul.f32 %v831, 1.442695
    %v843 = vpow.pop %v842
    %v844 = vadd.f32 %v833, 1.0
    %v845 = vadd.f32 %v835, 1.0
    %v846 = vadd.f32 %v837, 1.0
    %v847 = vadd.f32 %v839, 1.0
    %v848 = vadd.f32 %v841, 1.0
    %v849 = vadd.f32 %v843, 1.0
    %v850 = vrcp.pop %v844
    %v851 = vmul.f32 1.0, %v850
    %v852 = vrcp.pop %v845
    %v853 = vmul.f32 1.0, %v852
    %v854 = vrcp.pop %v846
    %v855 = vmul.f32 1.0, %v854
    %v856 = vrcp.pop %v847
    %v857 = vmul.f32 1.0, %v856
    %v858 = vrcp.pop %v848
    %v859 = vmul.f32 1.0, %v858
    %v860 = vrcp.pop %v849
    %v861 = vmul.f32 1.0, %v860
    %vm862 = vcmask 130053
    %863 = vst.msk [vmem:[#allocation9 - $0x5] sm:$0xe0] %vm862, %v851
    %864 = vst.msk [vmem:[#allocation9 + $0x3] sm:$0xff] %vm248, %v853
    %vm865 = vcmask 126976
    %866 = vst.msk [vmem:[#allocation9 + $0xb] sm:$0x1f] %vm865, %v855
    %867 = vst.msk [vmem:[#allocation9 + $0xb] sm:$0xe0] %vm862, %v857
    %868 = vst.msk [vmem:[#allocation9 + $0x13] sm:$0xff] %vm248, %v859
    %869 = vst.msk [vmem:[#allocation9 + $0x1b] sm:$0x1f] %vm865, %v861
    // Predicated region
    $region38: #{tpu_custom_call.1} parent=1 // pred_check
      _
    $region39: #{tpu_custom_call.1} parent=1 // pred_check_branch
      %871 = sbr.rel (0) target = $region41
    $region40: #{tpu_custom_call.1} parent=1 // pred_region
      %s873 = ssub.s32 512, 512
      %874 = vsyncadd [#allocation4], %s873
      %s875 = sshll.u32 [#allocation9], 4
      %s876 = int_to_ptr.vmem [resolvable:$true] %s875
      %881 = dma.vmem_to_hbm [thread:$0]  %s876, 512, %s6, [#allocation4], 128, 128, 8
    $region41: #{tpu_custom_call.1} parent=1 // pred_fallthru
      _
    // Predicated region
    $region42: #{tpu_custom_call.1} parent=1 // pred_check
      _
    $region43: #{tpu_custom_call.1} parent=1 // pred_check_branch
      %883 = sbr.rel (0) target = $region45
    $region44: #{tpu_custom_call.1} parent=1 // pred_region
      %884 = dma.done [#allocation4], 512
    $region45: #{tpu_custom_call.1} parent=1 // pred_fallthru
      _
    %885 = vsyncpa [#allocation4], 1
    %886 = vsyncpa [#allocation5], 1
    %887 = vsyncpa [#allocation7], 1

</llo_original>
